<compile_context>
chip_gen: v7x
topology: tpu7x:2x2x1
jax: 0.10.0
libtpu: 0.0.40
codegen_flags: <defaults>
</compile_context>

<pallas_src>
import functools

import jax
import jax.numpy as jnp
from jax.experimental import pallas as pl
from jax.experimental.pallas import tpu as pltpu

_LANES = 128
# 8192 rows x 128 lanes x 4 B = 4 MiB per f32 stream per block.
_MAX_BLOCK_M_NOMASK = 8192   # 3 streams, double-buffered -> ~24 MiB VMEM
_MAX_BLOCK_M_MASK = 4096     # 4 streams, double-buffered -> ~16 MiB VMEM
_MIN_SPLIT_ROWS = 512        # never hand a core a tile smaller than this
_VMEM_LIMIT_BYTES = 32 * 1024 * 1024


def _round_up(x, m):
    return pl.cdiv(x, m) * m


def _pack_granularity(dtype):
    """Sublane granularity (rows) required for a packed-layout tile."""
    dt = jnp.dtype(dtype)
    itemsize = 1 if dt == jnp.bool_ else dt.itemsize
    return max(8, 32 // max(itemsize, 1))     # f32->8, bf16->16, i8/bool->32


def _num_tensorcores():
    """Best-effort TensorCore count per chip (controls the grid split)."""
    try:
        kind = jax.devices()[0].device_kind.lower()
    except Exception:
        return 1
    if "v5e" in kind or "lite" in kind or "v6" in kind:
        return 1                              # single TC per chip
    if "v7" in kind or "v4" in kind or "v5p" in kind:
        return 2                              # dual-TC / megacore chips
    return 1


def _pow(v, gamma):
    """v ** gamma.  Integer / half-integer gamma -> multiply chain (+sqrt)."""
    g = float(gamma)
    two_g = 2.0 * g
    if two_g == int(two_g) and 0.0 <= g <= 8.0:
        gi = int(g)
        half = (int(two_g) & 1) == 1
        result = None
        if gi > 0:
            base, k = v, gi
            while k:
                if k & 1:
                    result = base if result is None else result * base
                k >>= 1
                if k:
                    base = base * base
        if half:
            s = jnp.sqrt(v)
            result = s if result is None else result * s
        return jnp.ones_like(v) if result is None else result
    return v ** g                              # generic EUP fallback


def _focal_loss_block(x, t, alpha, gamma):
    x = x.astype(jnp.float32)
    t = t.astype(jnp.float32)
    # e = exp(-|x|) is shared by the stable BCE term and the sigmoid; it never
    # overflows, unlike exp(-x) for large negative logits.
    e = jnp.exp(-jnp.abs(x))
    bce = jnp.maximum(x, 0.0) - x * t + jnp.log1p(e)
    inv = 1.0 / (1.0 + e)                      # exact divide: 1e-5 budget
    ei = e * inv
    pos = x >= 0.0
    probas = jnp.where(pos, inv, ei)           # == sigmoid(x)
    one_minus = jnp.where(pos, ei, inv)        # exact 1 - sigmoid(x), no cancel
    w_pos = _pow(one_minus, gamma)
    w_neg = _pow(probas, gamma)
    # t*alpha*w_pos + (1-t)*w_neg, folded to save VALU ops.
    w = w_neg + t * (alpha * w_pos - w_neg)
    return w * bce


def _focal_kernel(p_ref, t_ref, o_ref, *, alpha, gamma):
    loss = _focal_loss_block(p_ref[...], t_ref[...], alpha, gamma)
    o_ref[...] = loss.astype(o_ref.dtype)


def _focal_kernel_masked(p_ref, t_ref, m_ref, o_ref, *, alpha, gamma):
    loss = _focal_loss_block(p_ref[...], t_ref[...], alpha, gamma)
    o_ref[...] = (loss * m_ref[...].astype(jnp.float32)).astype(o_ref.dtype)


def bce_focal_loss(preds, targets, mask=None, *, alpha=0.25, gamma=2.0):
    """Elementwise BCE focal loss (matches BCEFocalLoss.forward)."""
    orig_shape = preds.shape
    n = preds.size
    out_dtype = (preds.dtype if jnp.issubdtype(preds.dtype, jnp.floating)
                 else jnp.float32)

    operand_arrays = [preds, targets] + ([] if mask is None else [mask])
    gran = max(_pack_granularity(a.dtype) for a in operand_arrays)
    gran = max(gran, _pack_granularity(out_dtype))

    rows = _round_up(pl.cdiv(max(n, 1), _LANES), gran)
    max_block = _MAX_BLOCK_M_NOMASK if mask is None else _MAX_BLOCK_M_MASK
    num_cores = _num_tensorcores()

    if rows > max_block:
        block_m = max_block
    elif num_cores >= 2 and rows >= 2 * num_cores * _MIN_SPLIT_ROWS:
        # >= 2 grid steps per TensorCore so each core can double-buffer.
        block_m = _round_up(pl.cdiv(rows, 2 * num_cores), gran)
    elif num_cores >= 2 and rows >= num_cores * _MIN_SPLIT_ROWS:
        block_m = _round_up(pl.cdiv(rows, num_cores), gran)
    else:
        block_m = rows                         # single full-array block
    grid = pl.cdiv(rows, block_m)              # last block may be partial

    n_pad = rows * _LANES

    def _prep(a):
        # Keep native dtype (widened in-kernel); zero-copy reshape on the
        # common divisible case, minimal sublane-granularity pad otherwise.
        flat = a.reshape(-1)
        if n_pad != n:
            # TODO(synk): an in-kernel masked store for the final block would
            # remove this copy for ragged element counts.
            flat = jnp.pad(flat, (0, n_pad - n))
        return flat.reshape(rows, _LANES)

    operands = [_prep(preds), _prep(targets)]
    if mask is None:
        kernel = functools.partial(_focal_kernel,
                                   alpha=float(alpha), gamma=float(gamma))
    else:
        operands.append(_prep(mask))
        kernel = functools.partial(_focal_kernel_masked,
                                   alpha=float(alpha), gamma=float(gamma))

    spec = pl.BlockSpec((block_m, _LANES), lambda i: (i, 0))

    out2 = pl.pallas_call(
        kernel,
        out_shape=jax.ShapeDtypeStruct((rows, _LANES), out_dtype),
        grid_spec=pltpu.PrefetchScalarGridSpec(
            num_scalar_prefetch=0,
            grid=(grid,),
            in_specs=[spec] * len(operands),
            out_specs=spec,
        ),
        compiler_params=pltpu.CompilerParams(
            dimension_semantics=("parallel",),
            vmem_limit_bytes=_VMEM_LIMIT_BYTES),
    )(*operands)

    if n_pad == n:
        return out2.reshape(orig_shape)
    return out2.reshape(-1)[:n].reshape(orig_shape)


def _reference(preds, targets, mask=None, alpha=0.25, gamma=2.0):
    x = preds.astype(jnp.float32)
    t = targets.astype(jnp.float32)
    bce = jnp.maximum(x, 0.0) - x * t + jnp.log1p(jnp.exp(-jnp.abs(x)))
    p = jax.nn.sigmoid(x)
    loss = t * alpha * (1.0 - p) ** gamma * bce + (1.0 - t) * p ** gamma * bce
    if mask is not None:
        loss = loss * mask.astype(jnp.float32)
    return loss


if __name__ == "__main__":
    key = jax.random.PRNGKey(0)
    k1, k2, k3, k4, k5, k6, k7 = jax.random.split(key, 7)

    # NCHW-style input matching typical use of the PyTorch module.
    shape = (2, 4, 16, 16)
    preds = jax.random.normal(k1, shape, dtype=jnp.float32) * 3.0
    targets = (jax.random.uniform(k2, shape) > 0.5).astype(jnp.float32)
    mask_f = (jax.random.uniform(k3, shape) > 0.3).astype(jnp.float32)
    mask_b = jax.random.uniform(k3, shape) > 0.3          # bool mask (packed)

    # Without mask (2 input streams, zero-copy reshape path).
    out = jax.block_until_ready(bce_focal_loss(preds, targets))
    ref = _reference(preds, targets)
    assert out.shape == shape and out.dtype == jnp.float32
    assert jnp.allclose(out, ref, atol=1e-5, rtol=1e-5)

    # With an f32 mask (3 input streams).
    out_m = jax.block_until_ready(bce_focal_loss(preds, targets, mask_f))
    ref_m = _reference(preds, targets, mask_f)
    assert jnp.allclose(out_m, ref_m, atol=1e-5, rtol=1e-5)

    # With a bool mask (narrow-dtype stream, 32-row sublane granularity).
    out_b = jax.block_until_ready(bce_focal_loss(preds, targets, mask_b))
    ref_b = _reference(preds, targets, mask_b)
    assert jnp.allclose(out_b, ref_b, atol=1e-5, rtol=1e-5)

    # Ragged element count (pad/slice tail path) + half-integer gamma
    # exercising the multiply-chain * sqrt power path.
    rshape = (3, 5, 7, 11)
    rp = jax.random.normal(k4, rshape, dtype=jnp.float32) * 2.0
    rt = (jax.random.uniform(k5, rshape) > 0.5).astype(jnp.float32)
    out_r = jax.block_until_ready(bce_focal_loss(rp, rt, gamma=1.5))
    ref_r = _reference(rp, rt, gamma=1.5)
    assert out_r.shape == rshape
    assert jnp.allclose(out_r, ref_r, atol=1e-5, rtol=1e-5)

    # Mid-size input (1024 rows): single block on v5e/v6e, split grid on
    # dual-TensorCore chips.
    mshape = (8, 8, 32, 64)
    mp = jax.random.normal(k6, mshape, dtype=jnp.float32) * 3.0
    mt = (jax.random.uniform(k7, mshape) > 0.5).astype(jnp.float32)
    out_mid = jax.block_until_ready(bce_focal_loss(mp, mt))
    ref_mid = _reference(mp, mt)
    assert jnp.allclose(out_mid, ref_mid, atol=1e-5, rtol=1e-5)

    print("KERNEL_OK")
</pallas_src>

<mosaic_0001>
module attributes {stable_mosaic.version = 11 : i64} {
  func.func @_focal_kernel(%arg0: i32, %arg1: memref<16x128xf32, #tpu.memory_space<vmem>>, %arg2: memref<16x128xf32, #tpu.memory_space<vmem>>, %arg3: memref<16x128xf32, #tpu.memory_space<vmem>>) attributes {dimension_semantics = [#tpu.dimension_semantics<parallel>], iteration_bounds = array<i64: 1>, scalar_prefetch = 0 : i64, scratch_operands = 0 : i64, tpu.core_type = #tpu.core_type<tc>, window_params = [{transform_indices = @transform_0, window_bounds = array<i64: 16, 128>}, {transform_indices = @transform_1, window_bounds = array<i64: 16, 128>}, {transform_indices = @transform_2, window_bounds = array<i64: 16, 128>}]} {
    %c0 = arith.constant 0 : index
    %c0_0 = arith.constant 0 : index
    %0 = vector.load %arg1[%c0, %c0_0] : memref<16x128xf32, #tpu.memory_space<vmem>>, vector<16x128xf32>
    %c0_1 = arith.constant 0 : index
    %c0_2 = arith.constant 0 : index
    %1 = vector.load %arg2[%c0_1, %c0_2] : memref<16x128xf32, #tpu.memory_space<vmem>>, vector<16x128xf32>
    %2 = math.absf %0 : vector<16x128xf32>
    %cst = arith.constant 0.000000e+00 : f32
    %3 = vector.broadcast %cst : f32 to vector<16x128xf32>
    %4 = arith.subf %3, %2 : vector<16x128xf32>
    %5 = math.exp %4 : vector<16x128xf32>
    %cst_3 = arith.constant 0.000000e+00 : f32
    %6 = vector.broadcast %cst_3 : f32 to vector<16x128xf32>
    %7 = arith.maximumf %0, %6 : vector<16x128xf32>
    %8 = arith.mulf %0, %1 : vector<16x128xf32>
    %9 = arith.subf %7, %8 : vector<16x128xf32>
    %10 = math.log1p %5 : vector<16x128xf32>
    %11 = arith.addf %9, %10 : vector<16x128xf32>
    %cst_4 = arith.constant 1.000000e+00 : f32
    %12 = vector.broadcast %cst_4 : f32 to vector<16x128xf32>
    %13 = arith.addf %12, %5 : vector<16x128xf32>
    %cst_5 = arith.constant 1.000000e+00 : f32
    %14 = vector.broadcast %cst_5 : f32 to vector<16x128xf32>
    %15 = arith.divf %14, %13 : vector<16x128xf32>
    %16 = arith.mulf %5, %15 : vector<16x128xf32>
    %cst_6 = arith.constant 0.000000e+00 : f32
    %17 = vector.broadcast %cst_6 : f32 to vector<16x128xf32>
    %18 = arith.cmpf oge, %0, %17 : vector<16x128xf32>
    %19 = arith.select %18, %15, %16 : vector<16x128xi1>, vector<16x128xf32>
    %20 = arith.select %18, %16, %15 : vector<16x128xi1>, vector<16x128xf32>
    %21 = arith.mulf %20, %20 : vector<16x128xf32>
    %22 = arith.mulf %19, %19 : vector<16x128xf32>
    %cst_7 = arith.constant 2.500000e-01 : f32
    %23 = vector.broadcast %cst_7 : f32 to vector<16x128xf32>
    %24 = arith.mulf %23, %21 : vector<16x128xf32>
    %25 = arith.subf %24, %22 : vector<16x128xf32>
    %26 = arith.mulf %1, %25 : vector<16x128xf32>
    %27 = arith.addf %22, %26 : vector<16x128xf32>
    %28 = arith.mulf %27, %11 : vector<16x128xf32>
    %c0_8 = arith.constant 0 : index
    %c0_9 = arith.constant 0 : index
    %29 = vector.load %arg3[%c0_8, %c0_9] : memref<16x128xf32, #tpu.memory_space<vmem>>, vector<16x128xf32>
    tpu.vector_store %arg3[%c0_8, %c0_9], %28 {strides = array<i32>} : memref<16x128xf32, #tpu.memory_space<vmem>>, vector<16x128xf32>,
    return
  }
  func.func @transform_0(%arg0: i32) -> (i32, i32) {
    %c0_i32 = arith.constant 0 : i32
    %c0_i32_0 = arith.constant 0 : i32
    return %arg0, %c0_i32 : i32, i32
  }
  func.func @transform_1(%arg0: i32) -> (i32, i32) {
    %c0_i32 = arith.constant 0 : i32
    %c0_i32_0 = arith.constant 0 : i32
    return %arg0, %c0_i32 : i32, i32
  }
  func.func @transform_2(%arg0: i32) -> (i32, i32) {
    %c0_i32 = arith.constant 0 : i32
    %c0_i32_0 = arith.constant 0 : i32
    return %arg0, %c0_i32 : i32, i32
  }
}

</mosaic_0001>

<llo_original>
// kernel: tpu_custom_call.1
$region0: #{tpu_custom_call.1}
  #allocation0 [shape = 'u32[]', space=smem, size = 0x4, offset = 0x4, fixed_abs, tag = 'smem constant byte address 0x4 - core index']
  #allocation1 [shape = 'u32[144,128]{1,0:T(1,128)}', space=vmem, size = 0x12000, scoped, tag = 'internal scratch']
  %s0 = inlined_call_operand.hbm [shape: f32[16,128], index: 0, kind: input, shape index: {}]
  %s1 = inlined_call_operand.hbm [shape: f32[16,128], index: 1, kind: input, shape index: {}]
  %s2 = inlined_call_operand.hbm [shape: f32[16,128], index: 2, kind: output, shape index: {}]
  %s3 = sld [smem:[#allocation0]]
  $region26: #{tpu_custom_call.1} parent=0
    _
  %s5 = ssub.s32 1, %s3
  %s6 = scalar_select 0, %s5, %s3
  $region1: #{tpu_custom_call.1} parent=0
    #allocation2 [shape = 'u8[8192]{0}', space=vmem, size = 0x2000, scoped, tag = 'input window, operand 0, single buffered']
    #allocation3 [shape = 's32[1]{0}', space=sflag, size = 0x4, scoped, tag = 'scoped memory for tpu_custom_call.1']
    #allocation4 [shape = 's32[1]{0}', space=sflag, size = 0x4, scoped, tag = 'scoped memory for tpu_custom_call.1']
    #allocation5 [shape = 'u8[8192]{0}', space=vmem, size = 0x2000, scoped, tag = 'input window, operand 1, single buffered']
    #allocation6 [shape = 's32[1]{0}', space=sflag, size = 0x4, scoped, tag = 'scoped memory for tpu_custom_call.1']
    #allocation7 [shape = 'u8[8192]{0}', space=vmem, size = 0x2000, scoped, tag = 'output window, operand 0, single buffered']
    %7 = vsyncpa [#allocation3], 0
    %8 = vsyncpa [#allocation6], 0
    %9 = vsyncpa [#allocation4], 0
    // Predicated region
    $region2: #{tpu_custom_call.1} parent=1 // pred_check
      _
    $region3: #{tpu_custom_call.1} parent=1 // pred_check_branch
      %11 = sbr.rel (0) target = $region5
    $region4: #{tpu_custom_call.1} parent=1 // pred_region
      %s13 = ssub.s32 256, 256
      %14 = vsyncadd [#allocation3], %s13
      %s15 = sshll.u32 [#allocation2], 4
      %s16 = int_to_ptr.vmem [resolvable:$true] %s15
      %21 = dma.hbm_to_vmem [thread:$0]  %s0, 256, %s16, [#allocation3], 128, 128, 8
    $region5: #{tpu_custom_call.1} parent=1 // pred_fallthru
      _
    // Predicated region
    $region6: #{tpu_custom_call.1} parent=1 // pred_check
      _
    $region7: #{tpu_custom_call.1} parent=1 // pred_check_branch
      %23 = sbr.rel (0) target = $region9
    $region8: #{tpu_custom_call.1} parent=1 // pred_region
      %s25 = ssub.s32 256, 256
      %26 = vsyncadd [#allocation6], %s25
      %s27 = sshll.u32 [#allocation5], 4
      %s28 = int_to_ptr.vmem [resolvable:$true] %s27
      %33 = dma.hbm_to_vmem [thread:$0]  %s1, 256, %s28, [#allocation6], 128, 128, 8
    $region9: #{tpu_custom_call.1} parent=1 // pred_fallthru
      _
    // Predicated region
    $region10: #{tpu_custom_call.1} parent=1 // pred_check
      _
    $region11: #{tpu_custom_call.1} parent=1 // pred_check_branch
      %35 = sbr.rel (0) target = $region13
    $region12: #{tpu_custom_call.1} parent=1 // pred_region
      %36 = dma.done [#allocation3], 256
    $region13: #{tpu_custom_call.1} parent=1 // pred_fallthru
      _
    // Predicated region
    $region14: #{tpu_custom_call.1} parent=1 // pred_check
      _
    $region15: #{tpu_custom_call.1} parent=1 // pred_check_branch
      %38 = sbr.rel (0) target = $region17
    $region16: #{tpu_custom_call.1} parent=1 // pred_region
      %39 = dma.done [#allocation6], 256
    $region17: #{tpu_custom_call.1} parent=1 // pred_fallthru
      _
    %v40 = vld [vmem:[#allocation2] sm:$0xff]
    %v41 = vld [vmem:[#allocation2 + $0x8] sm:$0xff]
    %v42 = vld [vmem:[#allocation5] sm:$0xff]
    %v43 = vld [vmem:[#allocation5 + $0x8] sm:$0xff]
    %v44 = vand.u32 2147483647, %v40
    %v45 = vand.u32 2147483647, %v41
    %v46 = vsub.f32 0.0, %v44
    %v47 = vsub.f32 0.0, %v45
    %v48 = vmul.f32 %v46, 1.442695
    %v49 = vpow.pop %v48
    %v50 = vmul.f32 %v47, 1.442695
    %v51 = vpow.pop %v50
    %v52 = vmax.f32 %v40, 0.0
    %v53 = vmax.f32 %v41, 0.0
    %v54 = vmul.f32 %v40, %v42
    %v55 = vmul.f32 %v41, %v43
    %v56 = vsub.f32 %v52, %v54
    %v57 = vsub.f32 %v53, %v55
    %v58 = vadd.f32 %v49, 1.0
    %v59 = vlog2.pop %v58
    %v60 = vmul.f32 %v59, 0.6931472
    %v61 = vmul.f32 -0.5, %v49
    %v62 = vadd.f32 %v61, 1.0
    %v63 = vmul.f32 %v62, %v49
    %v64 = vand.u32 2147483647, %v49
    %vm65 = vcmp.lt.f32.partialorder %v64, 0.0004427343
    %v66 = vsel %vm65, %v63, %v60
    %v67 = vadd.f32 %v51, 1.0
    %v68 = vlog2.pop %v67
    %v69 = vmul.f32 %v68, 0.6931472
    %v70 = vmul.f32 -0.5, %v51
    %v71 = vadd.f32 %v70, 1.0
    %v72 = vmul.f32 %v71, %v51
    %v73 = vand.u32 2147483647, %v51
    %vm74 = vcmp.lt.f32.partialorder %v73, 0.0004427343
    %v75 = vsel %vm74, %v72, %v69
    %v76 = vadd.f32 %v56, %v66
    %v77 = vadd.f32 %v57, %v75
    %v78 = vadd.f32 %v49, 1.0
    %v79 = vadd.f32 %v51, 1.0
    %v80 = vrcp.pop %v78
    %v81 = vmul.f32 1.0, %v80
    %v82 = vrcp.pop %v79
    %v83 = vmul.f32 1.0, %v82
    %v84 = vmul.f32 %v49, %v81
    %v85 = vmul.f32 %v51, %v83
    %vm86 = vcmp.ge.f32.partialorder %v40, 0.0
    %vm87 = vcmp.ge.f32.partialorder %v41, 0.0
    %v88 = vsel %vm86, %v81, %v84
    %v89 = vsel %vm87, %v83, %v85
    %v90 = vsel %vm86, %v84, %v81
    %v91 = vsel %vm87, %v85, %v83
    %v92 = vmul.f32 %v90, %v90
    %v93 = vmul.f32 %v91, %v91
    %v94 = vmul.f32 %v88, %v88
    %v95 = vmul.f32 %v89, %v89
    %v96 = vmul.f32 %v92, 0.25
    %v97 = vmul.f32 %v93, 0.25
    %v98 = vsub.f32 %v96, %v94
    %v99 = vsub.f32 %v97, %v95
    %v100 = vmul.f32 %v42, %v98
    %v101 = vmul.f32 %v43, %v99
    %v102 = vadd.f32 %v94, %v100
    %v103 = vadd.f32 %v95, %v101
    %v104 = vmul.f32 %v102, %v76
    %v105 = vmul.f32 %v103, %v77
    %106 = vst [vmem:[#allocation7] sm:$0xff] %v104
    %107 = vst [vmem:[#allocation7 + $0x8] sm:$0xff] %v105
    // Predicated region
    $region18: #{tpu_custom_call.1} parent=1 // pred_check
      _
    $region19: #{tpu_custom_call.1} parent=1 // pred_check_branch
      %109 = sbr.rel (0) target = $region21
    $region20: #{tpu_custom_call.1} parent=1 // pred_region
      %s111 = ssub.s32 256, 256
      %112 = vsyncadd [#allocation4], %s111
      %s113 = sshll.u32 [#allocation7], 4
      %s114 = int_to_ptr.vmem [resolvable:$true] %s113
      %119 = dma.vmem_to_hbm [thread:$0]  %s114, 256, %s2, [#allocation4], 128, 128, 8
    $region21: #{tpu_custom_call.1} parent=1 // pred_fallthru
      _
    // Predicated region
    $region22: #{tpu_custom_call.1} parent=1 // pred_check
      _
    $region23: #{tpu_custom_call.1} parent=1 // pred_check_branch
      %121 = sbr.rel (0) target = $region25
    $region24: #{tpu_custom_call.1} parent=1 // pred_region
      %122 = dma.done [#allocation4], 256
    $region25: #{tpu_custom_call.1} parent=1 // pred_fallthru
      _
    %123 = vsyncpa [#allocation3], 1
    %124 = vsyncpa [#allocation6], 1
    %125 = vsyncpa [#allocation4], 1

</llo_original>
